<compile_context>
chip_gen: v5e
topology: v5e:2x2
jax: 0.10.0
libtpu: 0.0.40
codegen_flags: <defaults>
</compile_context>

<pallas_src>
import jax
import jax.numpy as jnp
import numpy as np
from jax.experimental import pallas as pl
from jax.experimental.pallas import tpu as pltpu


def _round_up(n, m):
    return ((n + m - 1) // m) * m


def _mlp_kernel(x_ref, *refs):
    """Fused MLP forward for one batch tile.

    refs = (w0, b0, w1, b1, ..., wL, bL, out_ref)
      * weights are pre-transposed to (in, out) and bf16 (BN already folded in)
      * biases are (1, out) float32
    """
    out_ref = refs[-1]
    wb = refs[:-1]
    n_layers = len(wb) // 2

    h = x_ref[...]                                    # bf16 (TB, in_pad)
    for li in range(n_layers):                        # unrolled at trace time
        w = wb[2 * li][...]                           # bf16 (K, N), VMEM-resident
        b = wb[2 * li + 1][...]                       # f32  (1, N)
        acc = jnp.dot(h, w, preferred_element_type=jnp.float32) + b
        if li < n_layers - 1:
            h = jnp.maximum(acc, 0.0).astype(jnp.bfloat16)   # ReLU in f32, cast for MXU
        else:
            out_ref[...] = acc.astype(out_ref.dtype)


def simple_nn_forward(x, params, *, eps=1e-5):
    """Eval-mode forward of SimpleNN via a single fused Pallas kernel.

    params:
      bn1_gamma/beta/mean/var, bn2_gamma/beta/mean/var : (input_size,)
      linears : list of (W, b) in torch layout, W: (out, in), b: (out,)
    """
    batch, in_features = x.shape

    # ---- compose the two eval-mode BatchNorm1d layers into one scale/shift ----
    s1 = params["bn1_gamma"] / jnp.sqrt(params["bn1_var"] + eps)
    t1 = params["bn1_beta"] - params["bn1_mean"] * s1
    s2 = params["bn2_gamma"] / jnp.sqrt(params["bn2_var"] + eps)
    t2 = params["bn2_beta"] - params["bn2_mean"] * s2
    scale = s1 * s2
    shift = t1 * s2 + t2

    # ---- pre-transpose to (in, out); fold BN affine into the first Linear ----
    ws, bs = [], []
    for i, (W, b) in enumerate(params["linears"]):
        Wt = W.T.astype(jnp.float32)                  # (in, out)
        bb = b.astype(jnp.float32)
        if i == 0:
            bb = bb + shift @ Wt                      # uses the un-scaled weight
            Wt = Wt * scale[:, None]
        ws.append(Wt)
        bs.append(bb)
    out_features = ws[-1].shape[1]

    # ---- zero-pad every feature (lane) dim to a multiple of 128 ----
    dims = [_round_up(in_features, 128)] + [_round_up(w.shape[1], 128) for w in ws]
    w_pad, b_pad = [], []
    for i, (w, b) in enumerate(zip(ws, bs)):
        kp, npd = dims[i], dims[i + 1]
        wp = jnp.zeros((kp, npd), jnp.float32).at[: w.shape[0], : w.shape[1]].set(w)
        bp = jnp.zeros((1, npd), jnp.float32).at[0, : b.shape[0]].set(b)
        w_pad.append(wp.astype(jnp.bfloat16))         # bf16 weights: half the VMEM, 2x MXU
        b_pad.append(bp)                              # f32 bias

    # ---- pad / tile the batch dim (small batch -> single grid step) ----
    tb = 256 if batch >= 256 else _round_up(batch, 16)
    b_padded = _round_up(batch, tb)
    in_pad, out_pad = dims[0], dims[-1]
    xp = (
        jnp.zeros((b_padded, in_pad), jnp.float32)
        .at[:batch, :in_features]
        .set(x.astype(jnp.float32))
        .astype(jnp.bfloat16)
    )

    grid = (b_padded // tb,)

    in_specs = [pl.BlockSpec((tb, in_pad), lambda i: (i, 0))]
    args = [xp]
    for wp, bp in zip(w_pad, b_pad):
        in_specs.append(pl.BlockSpec(wp.shape, lambda i: (0, 0)))   # weight resident in VMEM
        in_specs.append(pl.BlockSpec(bp.shape, lambda i: (0, 0)))   # bias resident in VMEM
        args.extend([wp, bp])

    out = pl.pallas_call(
        _mlp_kernel,
        out_shape=jax.ShapeDtypeStruct((b_padded, out_pad), jnp.float32),
        grid_spec=pltpu.PrefetchScalarGridSpec(
            num_scalar_prefetch=0,
            grid=grid,
            in_specs=in_specs,
            out_specs=pl.BlockSpec((tb, out_pad), lambda i: (i, 0)),
        ),
        compiler_params=pltpu.CompilerParams(
            dimension_semantics=("parallel",),        # batch tiles -> 2 TCs on v7x
        ),
    )(*args)

    return out[:batch, :out_features]


def simple_nn_reference(x, params, *, eps=1e-5):
    """Pure-JAX f32 reference of the eval-mode PyTorch forward."""
    s1 = params["bn1_gamma"] / jnp.sqrt(params["bn1_var"] + eps)
    t1 = params["bn1_beta"] - params["bn1_mean"] * s1
    s2 = params["bn2_gamma"] / jnp.sqrt(params["bn2_var"] + eps)
    t2 = params["bn2_beta"] - params["bn2_mean"] * s2
    h = x * s1 + t1          # BatchNorm1d (eval)
    # GaussianNoise: identity in eval
    h = h * s2 + t2          # BatchNorm1d (eval)
    lin = params["linears"]
    for i, (W, b) in enumerate(lin):
        h = h @ W.T + b
        if i < len(lin) - 1:
            h = jnp.maximum(h, 0.0)   # ReLU (Dropout: identity in eval)
    return h


if __name__ == "__main__":
    key = jax.random.PRNGKey(0)
    batch, input_size, hidden_dim, output_size, num_layers = 16, 32, 64, 8, 3

    keys = iter(jax.random.split(key, 32))

    x = jax.random.normal(next(keys), (batch, input_size), jnp.float32)

    def make_linear(fan_in, fan_out):
        bound = 1.0 / np.sqrt(fan_in)
        W = jax.random.uniform(next(keys), (fan_out, fan_in), jnp.float32, -bound, bound)
        b = jax.random.uniform(next(keys), (fan_out,), jnp.float32, -bound, bound)
        return W, b

    # Linear(input, hidden), (num_layers-1) x Linear(hidden, hidden), Linear(hidden, output)
    linears = [make_linear(input_size, hidden_dim)]
    for _ in range(num_layers - 1):
        linears.append(make_linear(hidden_dim, hidden_dim))
    linears.append(make_linear(hidden_dim, output_size))

    def make_bn(n):
        gamma = 1.0 + 0.1 * jax.random.normal(next(keys), (n,), jnp.float32)
        beta = 0.1 * jax.random.normal(next(keys), (n,), jnp.float32)
        mean = 0.1 * jax.random.normal(next(keys), (n,), jnp.float32)
        var = jax.random.uniform(next(keys), (n,), jnp.float32, 0.5, 1.5)
        return gamma, beta, mean, var

    g1, b1, m1, v1 = make_bn(input_size)
    g2, b2, m2, v2 = make_bn(input_size)

    params = {
        "bn1_gamma": g1, "bn1_beta": b1, "bn1_mean": m1, "bn1_var": v1,
        "bn2_gamma": g2, "bn2_beta": b2, "bn2_mean": m2, "bn2_var": v2,
        "linears": linears,
    }

    out = simple_nn_forward(x, params)
    out = jax.block_until_ready(out)

    ref = simple_nn_reference(x, params)
    np.testing.assert_allclose(np.asarray(out), np.asarray(ref), rtol=5e-2, atol=5e-2)
    assert out.shape == (batch, output_size)

    print("KERNEL_OK")
</pallas_src>

<mosaic_0001>
module attributes {stable_mosaic.version = 11 : i64} {
  func.func @_mlp_kernel(%arg0: i32, %arg1: memref<16x128xbf16, #tpu.memory_space<vmem>>, %arg2: memref<128x128xbf16, #tpu.memory_space<vmem>>, %arg3: memref<1x128xf32, #tpu.memory_space<vmem>>, %arg4: memref<128x128xbf16, #tpu.memory_space<vmem>>, %arg5: memref<1x128xf32, #tpu.memory_space<vmem>>, %arg6: memref<128x128xbf16, #tpu.memory_space<vmem>>, %arg7: memref<1x128xf32, #tpu.memory_space<vmem>>, %arg8: memref<128x128xbf16, #tpu.memory_space<vmem>>, %arg9: memref<1x128xf32, #tpu.memory_space<vmem>>, %arg10: memref<16x128xf32, #tpu.memory_space<vmem>>) attributes {dimension_semantics = [#tpu.dimension_semantics<parallel>], iteration_bounds = array<i64: 1>, scalar_prefetch = 0 : i64, scratch_operands = 0 : i64, tpu.core_type = #tpu.core_type<tc>, window_params = [{transform_indices = @transform_0, window_bounds = array<i64: 16, 128>}, {pipeline_mode = #tpu.pipeline_mode<synchronous>, transform_indices = @transform_1, window_bounds = array<i64: 128, 128>}, {pipeline_mode = #tpu.pipeline_mode<synchronous>, transform_indices = @transform_2, window_bounds = array<i64: 1, 128>}, {pipeline_mode = #tpu.pipeline_mode<synchronous>, transform_indices = @transform_3, window_bounds = array<i64: 128, 128>}, {pipeline_mode = #tpu.pipeline_mode<synchronous>, transform_indices = @transform_4, window_bounds = array<i64: 1, 128>}, {pipeline_mode = #tpu.pipeline_mode<synchronous>, transform_indices = @transform_5, window_bounds = array<i64: 128, 128>}, {pipeline_mode = #tpu.pipeline_mode<synchronous>, transform_indices = @transform_6, window_bounds = array<i64: 1, 128>}, {pipeline_mode = #tpu.pipeline_mode<synchronous>, transform_indices = @transform_7, window_bounds = array<i64: 128, 128>}, {pipeline_mode = #tpu.pipeline_mode<synchronous>, transform_indices = @transform_8, window_bounds = array<i64: 1, 128>}, {transform_indices = @transform_9, window_bounds = array<i64: 16, 128>}]} {
    %c0 = arith.constant 0 : index
    %c0_0 = arith.constant 0 : index
    %0 = vector.load %arg1[%c0, %c0_0] : memref<16x128xbf16, #tpu.memory_space<vmem>>, vector<16x128xbf16>
    %c0_1 = arith.constant 0 : index
    %c0_2 = arith.constant 0 : index
    %1 = vector.load %arg2[%c0_1, %c0_2] : memref<128x128xbf16, #tpu.memory_space<vmem>>, vector<128x128xbf16>
    %c0_3 = arith.constant 0 : index
    %c0_4 = arith.constant 0 : index
    %2 = vector.load %arg3[%c0_3, %c0_4] : memref<1x128xf32, #tpu.memory_space<vmem>>, vector<1x128xf32>
    %cst = arith.constant dense<0.000000e+00> : vector<16x128xf32>
    %3 = tpu.matmul %0, %1, %cst {dimension_numbers = #tpu.dot_dimension_numbers<[1], [0], [0], [1], [0, 0, 1, 1], [], []>} : vector<16x128xbf16>, vector<128x128xbf16>, vector<16x128xf32> -> vector<16x128xf32>
    %4 = vector.broadcast %2 : vector<1x128xf32> to vector<16x128xf32>
    %5 = arith.addf %3, %4 : vector<16x128xf32>
    %cst_5 = arith.constant 0.000000e+00 : f32
    %6 = vector.broadcast %cst_5 : f32 to vector<16x128xf32>
    %7 = arith.maximumf %5, %6 : vector<16x128xf32>
    %8 = arith.truncf %7 : vector<16x128xf32> to vector<16x128xbf16>
    %c0_6 = arith.constant 0 : index
    %c0_7 = arith.constant 0 : index
    %9 = vector.load %arg4[%c0_6, %c0_7] : memref<128x128xbf16, #tpu.memory_space<vmem>>, vector<128x128xbf16>
    %c0_8 = arith.constant 0 : index
    %c0_9 = arith.constant 0 : index
    %10 = vector.load %arg5[%c0_8, %c0_9] : memref<1x128xf32, #tpu.memory_space<vmem>>, vector<1x128xf32>
    %cst_10 = arith.constant dense<0.000000e+00> : vector<16x128xf32>
    %11 = tpu.matmul %8, %9, %cst_10 {dimension_numbers = #tpu.dot_dimension_numbers<[1], [0], [0], [1], [0, 0, 1, 1], [], []>} : vector<16x128xbf16>, vector<128x128xbf16>, vector<16x128xf32> -> vector<16x128xf32>
    %12 = vector.broadcast %10 : vector<1x128xf32> to vector<16x128xf32>
    %13 = arith.addf %11, %12 : vector<16x128xf32>
    %cst_11 = arith.constant 0.000000e+00 : f32
    %14 = vector.broadcast %cst_11 : f32 to vector<16x128xf32>
    %15 = arith.maximumf %13, %14 : vector<16x128xf32>
    %16 = arith.truncf %15 : vector<16x128xf32> to vector<16x128xbf16>
    %c0_12 = arith.constant 0 : index
    %c0_13 = arith.constant 0 : index
    %17 = vector.load %arg6[%c0_12, %c0_13] : memref<128x128xbf16, #tpu.memory_space<vmem>>, vector<128x128xbf16>
    %c0_14 = arith.constant 0 : index
    %c0_15 = arith.constant 0 : index
    %18 = vector.load %arg7[%c0_14, %c0_15] : memref<1x128xf32, #tpu.memory_space<vmem>>, vector<1x128xf32>
    %cst_16 = arith.constant dense<0.000000e+00> : vector<16x128xf32>
    %19 = tpu.matmul %16, %17, %cst_16 {dimension_numbers = #tpu.dot_dimension_numbers<[1], [0], [0], [1], [0, 0, 1, 1], [], []>} : vector<16x128xbf16>, vector<128x128xbf16>, vector<16x128xf32> -> vector<16x128xf32>
    %20 = vector.broadcast %18 : vector<1x128xf32> to vector<16x128xf32>
    %21 = arith.addf %19, %20 : vector<16x128xf32>
    %cst_17 = arith.constant 0.000000e+00 : f32
    %22 = vector.broadcast %cst_17 : f32 to vector<16x128xf32>
    %23 = arith.maximumf %21, %22 : vector<16x128xf32>
    %24 = arith.truncf %23 : vector<16x128xf32> to vector<16x128xbf16>
    %c0_18 = arith.constant 0 : index
    %c0_19 = arith.constant 0 : index
    %25 = vector.load %arg8[%c0_18, %c0_19] : memref<128x128xbf16, #tpu.memory_space<vmem>>, vector<128x128xbf16>
    %c0_20 = arith.constant 0 : index
    %c0_21 = arith.constant 0 : index
    %26 = vector.load %arg9[%c0_20, %c0_21] : memref<1x128xf32, #tpu.memory_space<vmem>>, vector<1x128xf32>
    %cst_22 = arith.constant dense<0.000000e+00> : vector<16x128xf32>
    %27 = tpu.matmul %24, %25, %cst_22 {dimension_numbers = #tpu.dot_dimension_numbers<[1], [0], [0], [1], [0, 0, 1, 1], [], []>} : vector<16x128xbf16>, vector<128x128xbf16>, vector<16x128xf32> -> vector<16x128xf32>
    %28 = vector.broadcast %26 : vector<1x128xf32> to vector<16x128xf32>
    %29 = arith.addf %27, %28 : vector<16x128xf32>
    %c0_23 = arith.constant 0 : index
    %c0_24 = arith.constant 0 : index
    %30 = vector.load %arg10[%c0_23, %c0_24] : memref<16x128xf32, #tpu.memory_space<vmem>>, vector<16x128xf32>
    tpu.vector_store %arg10[%c0_23, %c0_24], %29 {strides = array<i32>} : memref<16x128xf32, #tpu.memory_space<vmem>>, vector<16x128xf32>,
    return
  }
  func.func @transform_0(%arg0: i32) -> (i32, i32) {
    %c0_i32 = arith.constant 0 : i32
    %c0_i32_0 = arith.constant 0 : i32
    return %arg0, %c0_i32 : i32, i32
  }
  func.func @transform_1(%arg0: i32) -> (i32, i32) {
    %c0_i32 = arith.constant 0 : i32
    %c0_i32_0 = arith.constant 0 : i32
    %c0_i32_1 = arith.constant 0 : i32
    return %c0_i32, %c0_i32_0 : i32, i32
  }
  func.func @transform_2(%arg0: i32) -> (i32, i32) {
    %c0_i32 = arith.constant 0 : i32
    %c0_i32_0 = arith.constant 0 : i32
    %c0_i32_1 = arith.constant 0 : i32
    return %c0_i32, %c0_i32_0 : i32, i32
  }
  func.func @transform_3(%arg0: i32) -> (i32, i32) {
    %c0_i32 = arith.constant 0 : i32
    %c0_i32_0 = arith.constant 0 : i32
    %c0_i32_1 = arith.constant 0 : i32
    return %c0_i32, %c0_i32_0 : i32, i32
  }
  func.func @transform_4(%arg0: i32) -> (i32, i32) {
    %c0_i32 = arith.constant 0 : i32
    %c0_i32_0 = arith.constant 0 : i32
    %c0_i32_1 = arith.constant 0 : i32
    return %c0_i32, %c0_i32_0 : i32, i32
  }
  func.func @transform_5(%arg0: i32) -> (i32, i32) {
    %c0_i32 = arith.constant 0 : i32
    %c0_i32_0 = arith.constant 0 : i32
    %c0_i32_1 = arith.constant 0 : i32
    return %c0_i32, %c0_i32_0 : i32, i32
  }
  func.func @transform_6(%arg0: i32) -> (i32, i32) {
    %c0_i32 = arith.constant 0 : i32
    %c0_i32_0 = arith.constant 0 : i32
    %c0_i32_1 = arith.constant 0 : i32
    return %c0_i32, %c0_i32_0 : i32, i32
  }
  func.func @transform_7(%arg0: i32) -> (i32, i32) {
    %c0_i32 = arith.constant 0 : i32
    %c0_i32_0 = arith.constant 0 : i32
    %c0_i32_1 = arith.constant 0 : i32
    return %c0_i32, %c0_i32_0 : i32, i32
  }
  func.func @transform_8(%arg0: i32) -> (i32, i32) {
    %c0_i32 = arith.constant 0 : i32
    %c0_i32_0 = arith.constant 0 : i32
    %c0_i32_1 = arith.constant 0 : i32
    return %c0_i32, %c0_i32_0 : i32, i32
  }
  func.func @transform_9(%arg0: i32) -> (i32, i32) {
    %c0_i32 = arith.constant 0 : i32
    %c0_i32_0 = arith.constant 0 : i32
    return %arg0, %c0_i32 : i32, i32
  }
}

</mosaic_0001>

<llo_original>
// kernel: tpu_custom_call.1
$region0: #{tpu_custom_call.1}
  #allocation0 [shape = 'u32[]', space=smem, size = 0x4, offset = 0x4, fixed_abs, tag = 'smem constant byte address 0x4 - core index']
  #allocation1 [shape = 'u32[72,128]{1,0:T(1,128)}', space=vmem, size = 0x9000, scoped, tag = 'internal scratch']
  %s0 = inlined_call_operand.hbm [shape: bf16[16,128], index: 0, kind: input, shape index: {}]
  %s1 = inlined_call_operand.hbm [shape: bf16[128,128], index: 1, kind: input, shape index: {}]
  %s2 = inlined_call_operand.vmem [shape: f32[1,128], index: 2, kind: input, shape index: {}]
  %s3 = inlined_call_operand.hbm [shape: bf16[128,128], index: 3, kind: input, shape index: {}]
  %s4 = inlined_call_operand.vmem [shape: f32[1,128], index: 4, kind: input, shape index: {}]
  %s5 = inlined_call_operand.hbm [shape: bf16[128,128], index: 5, kind: input, shape index: {}]
  %s6 = inlined_call_operand.vmem [shape: f32[1,128], index: 6, kind: input, shape index: {}]
  %s7 = inlined_call_operand.hbm [shape: bf16[128,128], index: 7, kind: input, shape index: {}]
  %s8 = inlined_call_operand.vmem [shape: f32[1,128], index: 8, kind: input, shape index: {}]
  %s9 = inlined_call_operand.hbm [shape: f32[16,128], index: 9, kind: output, shape index: {}]
  %s10 = sld [smem:[#allocation0]]
  $region66: #{tpu_custom_call.1} parent=0
    _
  %s12 = ssub.s32 1, %s10
  %s13 = scalar_select 0, %s12, %s10
  $region1: #{tpu_custom_call.1} parent=0
    #allocation2 [shape = 'u8[4096]{0}', space=vmem, size = 0x1000, scoped, tag = 'input window, operand 0, single buffered']
    #allocation3 [shape = 's32[1]{0}', space=sflag, size = 0x4, scoped, tag = 'scoped memory for tpu_custom_call.1']
    #allocation4 [shape = 's32[1]{0}', space=sflag, size = 0x4, scoped, tag = 'scoped memory for tpu_custom_call.1']
    #allocation5 [shape = 'u8[32768]{0}', space=vmem, size = 0x8000, scoped, tag = 'input window, operand 1, single buffered']
    #allocation6 [shape = 's32[1]{0}', space=sflag, size = 0x4, scoped, tag = 'scoped memory for tpu_custom_call.1']
    #allocation7 [shape = 'u8[32768]{0}', space=vmem, size = 0x8000, scoped, tag = 'input window, operand 3, single buffered']
    #allocation8 [shape = 'u8[32768]{0}', space=vmem, size = 0x8000, scoped, tag = 'input window, operand 5, single buffered']
    #allocation9 [shape = 's32[1]{0}', space=sflag, size = 0x4, scoped, tag = 'scoped memory for tpu_custom_call.1']
    #allocation10 [shape = 'u8[32768]{0}', space=vmem, size = 0x8000, scoped, tag = 'input window, operand 7, single buffered']
    #allocation11 [shape = 'u8[8192]{0}', space=vmem, size = 0x2000, scoped, tag = 'output window, operand 0, single buffered']
    %14 = vsyncpa [#allocation3], 0
    %15 = vsyncpa [#allocation6], 0
    %16 = vsyncpa [#allocation9], 0
    %17 = vsyncpa [#allocation4], 0
    // Predicated region
    $region2: #{tpu_custom_call.1} parent=1 // pred_check
      _
    $region3: #{tpu_custom_call.1} parent=1 // pred_check_branch
      %19 = sbr.rel (0) target = $region5
    $region4: #{tpu_custom_call.1} parent=1 // pred_region
      %21 = vsyncadd [#allocation3], 0
      %s22 = sshll.u32 %s0, 4
      %s23 = int_to_ptr.hbm [resolvable:$true] %s22
      %s24 = sshll.u32 [#allocation2], 4
      %s25 = int_to_ptr.vmem [resolvable:$true] %s24
      %30 = dma.hbm_to_vmem [thread:$0]  %s23, 128, %s25, [#allocation3], 64, 64, 4
    $region5: #{tpu_custom_call.1} parent=1 // pred_fallthru
      _
    // Predicated region
    $region6: #{tpu_custom_call.1} parent=1 // pred_check
      _
    $region7: #{tpu_custom_call.1} parent=1 // pred_check_branch
      %32 = sbr.rel (0) target = $region9
    $region8: #{tpu_custom_call.1} parent=1 // pred_region
      %34 = vsyncadd [#allocation6], 0
      %s35 = sshll.u32 %s1, 4
      %s36 = int_to_ptr.hbm [resolvable:$true] %s35
      %s37 = sshll.u32 [#allocation5], 4
      %s38 = int_to_ptr.vmem [resolvable:$true] %s37
      %43 = dma.hbm_to_vmem [thread:$0]  %s36, 1024, %s38, [#allocation6], 64, 64, 4
    $region9: #{tpu_custom_call.1} parent=1 // pred_fallthru
      _
    // Predicated region
    $region10: #{tpu_custom_call.1} parent=1 // pred_check
      _
    $region11: #{tpu_custom_call.1} parent=1 // pred_check_branch
      %45 = sbr.rel (0) target = $region13
    $region12: #{tpu_custom_call.1} parent=1 // pred_region
      _
    $region13: #{tpu_custom_call.1} parent=1 // pred_fallthru
      _
    // Predicated region
    $region14: #{tpu_custom_call.1} parent=1 // pred_check
      _
    $region15: #{tpu_custom_call.1} parent=1 // pred_check_branch
      %47 = sbr.rel (0) target = $region17
    $region16: #{tpu_custom_call.1} parent=1 // pred_region
      %49 = vsyncadd [#allocation6], 0
      %s50 = sshll.u32 %s3, 4
      %s51 = int_to_ptr.hbm [resolvable:$true] %s50
      %s52 = sshll.u32 [#allocation7], 4
      %s53 = int_to_ptr.vmem [resolvable:$true] %s52
      %58 = dma.hbm_to_vmem [thread:$0]  %s51, 1024, %s53, [#allocation6], 64, 64, 4
    $region17: #{tpu_custom_call.1} parent=1 // pred_fallthru
      _
    // Predicated region
    $region18: #{tpu_custom_call.1} parent=1 // pred_check
      _
    $region19: #{tpu_custom_call.1} parent=1 // pred_check_branch
      %60 = sbr.rel (0) target = $region21
    $region20: #{tpu_custom_call.1} parent=1 // pred_region
      _
    $region21: #{tpu_custom_call.1} parent=1 // pred_fallthru
      _
    // Predicated region
    $region22: #{tpu_custom_call.1} parent=1 // pred_check
      _
    $region23: #{tpu_custom_call.1} parent=1 // pred_check_branch
      %62 = sbr.rel (0) target = $region25
    $region24: #{tpu_custom_call.1} parent=1 // pred_region
      %64 = vsyncadd [#allocation9], 0
      %s65 = sshll.u32 %s5, 4
      %s66 = int_to_ptr.hbm [resolvable:$true] %s65
      %s67 = sshll.u32 [#allocation8], 4
      %s68 = int_to_ptr.vmem [resolvable:$true] %s67
      %73 = dma.hbm_to_vmem [thread:$0]  %s66, 1024, %s68, [#allocation9], 64, 64, 4
    $region25: #{tpu_custom_call.1} parent=1 // pred_fallthru
      _
    // Predicated region
    $region26: #{tpu_custom_call.1} parent=1 // pred_check
      _
    $region27: #{tpu_custom_call.1} parent=1 // pred_check_branch
      %75 = sbr.rel (0) target = $region29
    $region28: #{tpu_custom_call.1} parent=1 // pred_region
      _
    $region29: #{tpu_custom_call.1} parent=1 // pred_fallthru
      _
    // Predicated region
    $region30: #{tpu_custom_call.1} parent=1 // pred_check
      _
    $region31: #{tpu_custom_call.1} parent=1 // pred_check_branch
      %77 = sbr.rel (0) target = $region33
    $region32: #{tpu_custom_call.1} parent=1 // pred_region
      %79 = vsyncadd [#allocation9], 0
      %s80 = sshll.u32 %s7, 4
      %s81 = int_to_ptr.hbm [resolvable:$true] %s80
      %s82 = sshll.u32 [#allocation10], 4
      %s83 = int_to_ptr.vmem [resolvable:$true] %s82
      %88 = dma.hbm_to_vmem [thread:$0]  %s81, 1024, %s83, [#allocation9], 64, 64, 4
    $region33: #{tpu_custom_call.1} parent=1 // pred_fallthru
      _
    // Predicated region
    $region34: #{tpu_custom_call.1} parent=1 // pred_check
      _
    $region35: #{tpu_custom_call.1} parent=1 // pred_check_branch
      %90 = sbr.rel (0) target = $region37
    $region36: #{tpu_custom_call.1} parent=1 // pred_region
      _
    $region37: #{tpu_custom_call.1} parent=1 // pred_fallthru
      _
    // Predicated region
    $region38: #{tpu_custom_call.1} parent=1 // pred_check
      _
    $region39: #{tpu_custom_call.1} parent=1 // pred_check_branch
      %92 = sbr.rel (0) target = $region41
    $region40: #{tpu_custom_call.1} parent=1 // pred_region
      %94 = dma.done [#allocation3], 128
    $region41: #{tpu_custom_call.1} parent=1 // pred_fallthru
      _
    // Predicated region
    $region42: #{tpu_custom_call.1} parent=1 // pred_check
      _
    $region43: #{tpu_custom_call.1} parent=1 // pred_check_branch
      %96 = sbr.rel (0) target = $region45
    $region44: #{tpu_custom_call.1} parent=1 // pred_region
      %98 = dma.done [#allocation6], 1024
    $region45: #{tpu_custom_call.1} parent=1 // pred_fallthru
      _
    // Predicated region
    $region46: #{tpu_custom_call.1} parent=1 // pred_check
      _
    $region47: #{tpu_custom_call.1} parent=1 // pred_check_branch
      %100 = sbr.rel (0) target = $region49
    $region48: #{tpu_custom_call.1} parent=1 // pred_region
      %102 = dma.done [#allocation6], 1024
    $region49: #{tpu_custom_call.1} parent=1 // pred_fallthru
      _
    // Predicated region
    $region50: #{tpu_custom_call.1} parent=1 // pred_check
      _
    $region51: #{tpu_custom_call.1} parent=1 // pred_check_branch
      %104 = sbr.rel (0) target = $region53
    $region52: #{tpu_custom_call.1} parent=1 // pred_region
      %106 = dma.done [#allocation9], 1024
    $region53: #{tpu_custom_call.1} parent=1 // pred_fallthru
      _
    // Predicated region
    $region54: #{tpu_custom_call.1} parent=1 // pred_check
      _
    $region55: #{tpu_custom_call.1} parent=1 // pred_check_branch
      %108 = sbr.rel (0) target = $region57
    $region56: #{tpu_custom_call.1} parent=1 // pred_region
      %110 = dma.done [#allocation9], 1024
    $region57: #{tpu_custom_call.1} parent=1 // pred_fallthru
      _
    %v111 = vld [vmem:[#allocation2] sm:$0xf]
    %v112 = vld [vmem:[#allocation2 + $0x4] sm:$0xf]
    %v113 = vld [vmem:[#allocation5] sm:$0xf]
    %v114 = vld [vmem:[#allocation5 + $0x4] sm:$0xf]
    %v115 = vld [vmem:[#allocation5 + $0x8] sm:$0xf]
    %v116 = vld [vmem:[#allocation5 + $0xc] sm:$0xf]
    %v117 = vld [vmem:[#allocation5 + $0x10] sm:$0xf]
    %v118 = vld [vmem:[#allocation5 + $0x14] sm:$0xf]
    %v119 = vld [vmem:[#allocation5 + $0x18] sm:$0xf]
    %v120 = vld [vmem:[#allocation5 + $0x1c] sm:$0xf]
    %v121 = vld [vmem:[#allocation5 + $0x20] sm:$0xf]
    %v122 = vld [vmem:[#allocation5 + $0x24] sm:$0xf]
    %v123 = vld [vmem:[#allocation5 + $0x28] sm:$0xf]
    %v124 = vld [vmem:[#allocation5 + $0x2c] sm:$0xf]
    %v125 = vld [vmem:[#allocation5 + $0x30] sm:$0xf]
    %v126 = vld [vmem:[#allocation5 + $0x34] sm:$0xf]
    %v127 = vld [vmem:[#allocation5 + $0x38] sm:$0xf]
    %v128 = vld [vmem:[#allocation5 + $0x3c] sm:$0xf]
    %v129 = vld [vmem:[%s2] sm:$0x1]
    %v131 = vperm.slane %v129, 0
    %v135 = vunpack.c.l.b16 %v111
    %v136 = vunpack.c.l.b16 %v112
    %v137 = vpack.c.b16 %v136, %v135
    %v155 = vunpack.c.l.b16 %v113
    %v156 = vunpack.c.l.b16 %v114
    %v157 = vunpack.c.l.b16 %v115
    %v158 = vunpack.c.l.b16 %v116
    %v159 = vunpack.c.l.b16 %v117
    %v160 = vunpack.c.l.b16 %v118
    %v161 = vunpack.c.l.b16 %v119
    %v162 = vunpack.c.l.b16 %v120
    %v163 = vunpack.c.l.b16 %v121
    %v164 = vunpack.c.l.b16 %v122
    %v165 = vunpack.c.l.b16 %v123
    %v166 = vunpack.c.l.b16 %v124
    %v167 = vunpack.c.l.b16 %v125
    %v168 = vunpack.c.l.b16 %v126
    %v169 = vunpack.c.l.b16 %v127
    %v170 = vunpack.c.l.b16 %v128
    %v171 = vpack.c.b16 %v156, %v155
    %v172 = vpack.c.b16 %v158, %v157
    %v173 = vpack.c.b16 %v160, %v159
    %v174 = vpack.c.b16 %v162, %v161
    %v175 = vpack.c.b16 %v164, %v163
    %v176 = vpack.c.b16 %v166, %v165
    %v177 = vpack.c.b16 %v168, %v167
    %v178 = vpack.c.b16 %v170, %v169
    %187 = vmatpush.bf16.msra.mxu0 %v178
    %188 = vmatpush.bf16.msra.mxu0 %v177
    %189 = vmatpush.bf16.msra.mxu0 %v176
    %190 = vmatpush.bf16.msra.mxu0 %v175
    %191 = vmatpush.bf16.msra.mxu0 %v174
    %192 = vmatpush.bf16.msra.mxu0 %v173
    %193 = vmatpush.bf16.msra.mxu0 %v172
    %194 = vmatpush.bf16.msra.mxu0 %v171
    %195 = vmatmul.bf16.gmra.mxu0 %v137
    %v196 = vpop.f32.mrf.mxu0
    %v197 = vadd.f32 %v131, %v196
    %v198 = vpop.f32.mrf.mxu0
    %v199 = vadd.f32 %v131, %v198
    %200 = vdwg.mxu0
    %v201 = vmax.f32 %v197, 0.0
    %v202 = vmax.f32 %v199, 0.0
    %v203 = vpack.c.bf16 %v202, %v201
    %v204 = vld [vmem:[#allocation7] sm:$0xf]
    %v205 = vld [vmem:[#allocation7 + $0x4] sm:$0xf]
    %v206 = vld [vmem:[#allocation7 + $0x8] sm:$0xf]
    %v207 = vld [vmem:[#allocation7 + $0xc] sm:$0xf]
    %v208 = vld [vmem:[#allocation7 + $0x10] sm:$0xf]
    %v209 = vld [vmem:[#allocation7 + $0x14] sm:$0xf]
    %v210 = vld [vmem:[#allocation7 + $0x18] sm:$0xf]
    %v211 = vld [vmem:[#allocation7 + $0x1c] sm:$0xf]
    %v212 = vld [vmem:[#allocation7 + $0x20] sm:$0xf]
    %v213 = vld [vmem:[#allocation7 + $0x24] sm:$0xf]
    %v214 = vld [vmem:[#allocation7 + $0x28] sm:$0xf]
    %v215 = vld [vmem:[#allocation7 + $0x2c] sm:$0xf]
    %v216 = vld [vmem:[#allocation7 + $0x30] sm:$0xf]
    %v217 = vld [vmem:[#allocation7 + $0x34] sm:$0xf]
    %v218 = vld [vmem:[#allocation7 + $0x38] sm:$0xf]
    %v219 = vld [vmem:[#allocation7 + $0x3c] sm:$0xf]
    %v220 = vld [vmem:[%s4] sm:$0x1]
    %v222 = vperm.slane %v220, 0
    %v240 = vunpack.c.l.b16 %v204
    %v241 = vunpack.c.l.b16 %v205
    %v242 = vunpack.c.l.b16 %v206
    %v243 = vunpack.c.l.b16 %v207
    %v244 = vunpack.c.l.b16 %v208
    %v245 = vunpack.c.l.b16 %v209
    %v246 = vunpack.c.l.b16 %v210
    %v247 = vunpack.c.l.b16 %v211
    %v248 = vunpack.c.l.b16 %v212
    %v249 = vunpack.c.l.b16 %v213
    %v250 = vunpack.c.l.b16 %v214
    %v251 = vunpack.c.l.b16 %v215
    %v252 = vunpack.c.l.b16 %v216
    %v253 = vunpack.c.l.b16 %v217
    %v254 = vunpack.c.l.b16 %v218
    %v255 = vunpack.c.l.b16 %v219
    %v256 = vpack.c.b16 %v241, %v240
    %v257 = vpack.c.b16 %v243, %v242
    %v258 = vpack.c.b16 %v245, %v244
    %v259 = vpack.c.b16 %v247, %v246
    %v260 = vpack.c.b16 %v249, %v248
    %v261 = vpack.c.b16 %v251, %v250
    %v262 = vpack.c.b16 %v253, %v252
    %v263 = vpack.c.b16 %v255, %v254
    %272 = vmatpush.bf16.msra.mxu0 %v263
    %273 = vmatpush.bf16.msra.mxu0 %v262
    %274 = vmatpush.bf16.msra.mxu0 %v261
    %275 = vmatpush.bf16.msra.mxu0 %v260
    %276 = vmatpush.bf16.msra.mxu0 %v259
    %277 = vmatpush.bf16.msra.mxu0 %v258
    %278 = vmatpush.bf16.msra.mxu0 %v257
    %279 = vmatpush.bf16.msra.mxu0 %v256
    %280 = vmatmul.bf16.gmra.mxu0 %v203
    %v281 = vpop.f32.mrf.mxu0
    %v282 = vadd.f32 %v222, %v281
    %v283 = vpop.f32.mrf.mxu0
    %v284 = vadd.f32 %v222, %v283
    %285 = vdwg.mxu0
    %v286 = vmax.f32 %v282, 0.0
    %v287 = vmax.f32 %v284, 0.0
    %v288 = vpack.c.bf16 %v287, %v286
    %v289 = vld [vmem:[#allocation8] sm:$0xf]
    %v290 = vld [vmem:[#allocation8 + $0x4] sm:$0xf]
    %v291 = vld [vmem:[#allocation8 + $0x8] sm:$0xf]
    %v292 = vld [vmem:[#allocation8 + $0xc] sm:$0xf]
    %v293 = vld [vmem:[#allocation8 + $0x10] sm:$0xf]
    %v294 = vld [vmem:[#allocation8 + $0x14] sm:$0xf]
    %v295 = vld [vmem:[#allocation8 + $0x18] sm:$0xf]
    %v296 = vld [vmem:[#allocation8 + $0x1c] sm:$0xf]
    %v297 = vld [vmem:[#allocation8 + $0x20] sm:$0xf]
    %v298 = vld [vmem:[#allocation8 + $0x24] sm:$0xf]
    %v299 = vld [vmem:[#allocation8 + $0x28] sm:$0xf]
    %v300 = vld [vmem:[#allocation8 + $0x2c] sm:$0xf]
    %v301 = vld [vmem:[#allocation8 + $0x30] sm:$0xf]
    %v302 = vld [vmem:[#allocation8 + $0x34] sm:$0xf]
    %v303 = vld [vmem:[#allocation8 + $0x38] sm:$0xf]
    %v304 = vld [vmem:[#allocation8 + $0x3c] sm:$0xf]
    %v305 = vld [vmem:[%s6] sm:$0x1]
    %v307 = vperm.slane %v305, 0
    %v325 = vunpack.c.l.b16 %v289
    %v326 = vunpack.c.l.b16 %v290
    %v327 = vunpack.c.l.b16 %v291
    %v328 = vunpack.c.l.b16 %v292
    %v329 = vunpack.c.l.b16 %v293
    %v330 = vunpack.c.l.b16 %v294
    %v331 = vunpack.c.l.b16 %v295
    %v332 = vunpack.c.l.b16 %v296
    %v333 = vunpack.c.l.b16 %v297
    %v334 = vunpack.c.l.b16 %v298
    %v335 = vunpack.c.l.b16 %v299
    %v336 = vunpack.c.l.b16 %v300
    %v337 = vunpack.c.l.b16 %v301
    %v338 = vunpack.c.l.b16 %v302
    %v339 = vunpack.c.l.b16 %v303
    %v340 = vunpack.c.l.b16 %v304
    %v341 = vpack.c.b16 %v326, %v325
    %v342 = vpack.c.b16 %v328, %v327
    %v343 = vpack.c.b16 %v330, %v329
    %v344 = vpack.c.b16 %v332, %v331
    %v345 = vpack.c.b16 %v334, %v333
    %v346 = vpack.c.b16 %v336, %v335
    %v347 = vpack.c.b16 %v338, %v337
    %v348 = vpack.c.b16 %v340, %v339
    %357 = vmatpush.bf16.msra.mxu0 %v348
    %358 = vmatpush.bf16.msra.mxu0 %v347
    %359 = vmatpush.bf16.msra.mxu0 %v346
    %360 = vmatpush.bf16.msra.mxu0 %v345
    %361 = vmatpush.bf16.msra.mxu0 %v344
    %362 = vmatpush.bf16.msra.mxu0 %v343
    %363 = vmatpush.bf16.msra.mxu0 %v342
    %364 = vmatpush.bf16.msra.mxu0 %v341
    %365 = vmatmul.bf16.gmra.mxu0 %v288
    %v366 = vpop.f32.mrf.mxu0
    %v367 = vadd.f32 %v307, %v366
    %v368 = vpop.f32.mrf.mxu0
    %v369 = vadd.f32 %v307, %v368
    %370 = vdwg.mxu0
    %v371 = vmax.f32 %v367, 0.0
    %v372 = vmax.f32 %v369, 0.0
    %v373 = vpack.c.bf16 %v372, %v371
    %v374 = vld [vmem:[#allocation10] sm:$0xf]
    %v375 = vld [vmem:[#allocation10 + $0x4] sm:$0xf]
    %v376 = vld [vmem:[#allocation10 + $0x8] sm:$0xf]
    %v377 = vld [vmem:[#allocation10 + $0xc] sm:$0xf]
    %v378 = vld [vmem:[#allocation10 + $0x10] sm:$0xf]
    %v379 = vld [vmem:[#allocation10 + $0x14] sm:$0xf]
    %v380 = vld [vmem:[#allocation10 + $0x18] sm:$0xf]
    %v381 = vld [vmem:[#allocation10 + $0x1c] sm:$0xf]
    %v382 = vld [vmem:[#allocation10 + $0x20] sm:$0xf]
    %v383 = vld [vmem:[#allocation10 + $0x24] sm:$0xf]
    %v384 = vld [vmem:[#allocation10 + $0x28] sm:$0xf]
    %v385 = vld [vmem:[#allocation10 + $0x2c] sm:$0xf]
    %v386 = vld [vmem:[#allocation10 + $0x30] sm:$0xf]
    %v387 = vld [vmem:[#allocation10 + $0x34] sm:$0xf]
    %v388 = vld [vmem:[#allocation10 + $0x38] sm:$0xf]
    %v389 = vld [vmem:[#allocation10 + $0x3c] sm:$0xf]
    %v390 = vld [vmem:[%s8] sm:$0x1]
    %v392 = vperm.slane %v390, 0
    %v410 = vunpack.c.l.b16 %v374
    %v411 = vunpack.c.l.b16 %v375
    %v412 = vunpack.c.l.b16 %v376
    %v413 = vunpack.c.l.b16 %v377
    %v414 = vunpack.c.l.b16 %v378
    %v415 = vunpack.c.l.b16 %v379
    %v416 = vunpack.c.l.b16 %v380
    %v417 = vunpack.c.l.b16 %v381
    %v418 = vunpack.c.l.b16 %v382
    %v419 = vunpack.c.l.b16 %v383
    %v420 = vunpack.c.l.b16 %v384
    %v421 = vunpack.c.l.b16 %v385
    %v422 = vunpack.c.l.b16 %v386
    %v423 = vunpack.c.l.b16 %v387
    %v424 = vunpack.c.l.b16 %v388
    %v425 = vunpack.c.l.b16 %v389
    %v426 = vpack.c.b16 %v411, %v410
    %v427 = vpack.c.b16 %v413, %v412
    %v428 = vpack.c.b16 %v415, %v414
    %v429 = vpack.c.b16 %v417, %v416
    %v430 = vpack.c.b16 %v419, %v418
    %v431 = vpack.c.b16 %v421, %v420
    %v432 = vpack.c.b16 %v423, %v422
    %v433 = vpack.c.b16 %v425, %v424
    %442 = vmatpush.bf16.msra.mxu0 %v433
    %443 = vmatpush.bf16.msra.mxu0 %v432
    %444 = vmatpush.bf16.msra.mxu0 %v431
    %445 = vmatpush.bf16.msra.mxu0 %v430
    %446 = vmatpush.bf16.msra.mxu0 %v429
    %447 = vmatpush.bf16.msra.mxu0 %v428
    %448 = vmatpush.bf16.msra.mxu0 %v427
    %449 = vmatpush.bf16.msra.mxu0 %v426
    %450 = vmatmul.bf16.gmra.mxu0 %v373
    %v451 = vpop.f32.mrf.mxu0
    %v452 = vadd.f32 %v392, %v451
    %v453 = vpop.f32.mrf.mxu0
    %v454 = vadd.f32 %v392, %v453
    %455 = vdwg.mxu0
    %456 = vst [vmem:[#allocation11] sm:$0xff] %v452
    %457 = vst [vmem:[#allocation11 + $0x8] sm:$0xff] %v454
    // Predicated region
    $region58: #{tpu_custom_call.1} parent=1 // pred_check
      _
    $region59: #{tpu_custom_call.1} parent=1 // pred_check_branch
      %459 = sbr.rel (0) target = $region61
    $region60: #{tpu_custom_call.1} parent=1 // pred_region
      %461 = vsyncadd [#allocation4], 0
      %s462 = sshll.u32 [#allocation11], 4
      %s463 = int_to_ptr.vmem [resolvable:$true] %s462
      %s464 = sshll.u32 %s9, 4
      %s465 = int_to_ptr.hbm [resolvable:$true] %s464
      %470 = dma.vmem_to_hbm [thread:$0]  %s463, 256, %s465, [#allocation4], 128, 128, 8
    $region61: #{tpu_custom_call.1} parent=1 // pred_fallthru
      _
    // Predicated region
    $region62: #{tpu_custom_call.1} parent=1 // pred_check
      _
    $region63: #{tpu_custom_call.1} parent=1 // pred_check_branch
      %472 = sbr.rel (0) target = $region65
    $region64: #{tpu_custom_call.1} parent=1 // pred_region
      %474 = dma.done [#allocation4], 256
    $region65: #{tpu_custom_call.1} parent=1 // pred_fallthru
      _
    %475 = vsyncpa [#allocation3], 1
    %476 = vsyncpa [#allocation6], 1
    %477 = vsyncpa [#allocation9], 1
    %478 = vsyncpa [#allocation4], 1

</llo_original>
